<compile_context>
chip_gen: v7x
topology: tpu7x:2x2x1
jax: 0.10.0
libtpu: 0.0.40
codegen_flags: <defaults>
</compile_context>

<pallas_src>
import functools

import jax
import jax.numpy as jnp
from jax.experimental import pallas as pl
from jax.experimental.pallas import tpu as pltpu

LANES = 128
SUBLANES = 8
ACC_ROWS = 32                    # widened accumulator: 4 independent f32 vregs
BLOCK_BYTES = 8 * 1024 * 1024    # per-step DMA byte budget (16 MiB double-buffered)


def _partial_sum_kernel(x_ref, o_ref, *, rows_valid, out_rows, any_mask):
    """Grid: (core_split, row_blocks).

    Axis 0 ("parallel") shards independent halves of the row-block range over
    TensorCores (megacore chips); axis 1 ("arbitrary") is the sequential
    reduction over row blocks.  o_ref is an (out_rows, 128) f32 accumulator
    that stays resident across axis 1 (same output block index every step).
    The hot loop is pure vector loads + VPU adds; the ragged-edge mask runs
    (via pl.when) only on the block(s) that actually straddle/exceed
    rows_valid, so streaming blocks never pay the iota/compare/select cost.
    """
    i = pl.program_id(1)

    @pl.when(i == 0)
    def _():
        o_ref[...] = jnp.zeros_like(o_ref)

    br = x_ref.shape[0]

    def accumulate(x):
        if br % out_rows == 0:
            # (br,128)->(br/out_rows,out_rows,128) is tile-preserving (free);
            # the axis-0 sum is element-wise vreg adds spread over
            # out_rows//8 independent accumulator vregs (no single add chain).
            o_ref[...] += jnp.sum(x.reshape(br // out_rows, out_rows, LANES), axis=0)
        else:
            # Tiny single-block fallback (rows not a multiple of 8).
            o_ref[0:1, :] += jnp.sum(x, axis=0, keepdims=True)

    if not any_mask:
        accumulate(x_ref[...].astype(jnp.float32))
    else:
        # Unclamped logical block index.  int32 row math is fine for < 2^31
        # rows (~1 TB of f32); beyond that is not a realistic loss input.
        b = pl.program_id(0) * pl.num_programs(1) + i
        row0 = b * br
        # Edge: partial last block, or a clamped redundant block on the short
        # core split (row0 >= rows_valid there, so it is fully zeroed).
        is_edge = row0 + br > rows_valid

        @pl.when(jnp.logical_not(is_edge))
        def _():
            accumulate(x_ref[...].astype(jnp.float32))

        @pl.when(is_edge)
        def _():
            x = x_ref[...].astype(jnp.float32)
            row_ids = row0 + jax.lax.broadcasted_iota(jnp.int32, x.shape, 0)
            accumulate(jnp.where(row_ids < rows_valid, x, 0.0))


def _default_num_core_splits():
    """2-way grid split only on 2-TensorCore (megacore) chips, else 1.

    On single-TC v5e/v6e the 'parallel' axis is just two sequential groups:
    zero upside, and odd block counts would force a redundant block re-read
    plus edge masking.  Correctness does not depend on this choice.
    """
    try:
        kind = jax.devices()[0].device_kind.lower()
    except Exception:
        return 1
    if "v7" in kind or "v4" in kind:
        return 2
    if "v5" in kind and "lite" not in kind and "v5e" not in kind:
        return 2  # v5p
    return 1


def generator_loss(pred, *, block_rows=None, num_core_splits=None,
                   min_kernel_bytes=256 * 1024):
    """-pred.mean() (GeneratorLoss.forward), computed with a Pallas TPU kernel."""
    n = pred.size
    out_dtype = pred.dtype if jnp.issubdtype(pred.dtype, jnp.floating) else jnp.float32

    # Tiny inputs: kernel launch + pipeline prologue dwarfs the reduction;
    # XLA's fused reduction wins on all generations.
    if n * pred.dtype.itemsize < min_kernel_bytes:
        return (-jnp.mean(pred.astype(jnp.float32))).astype(out_dtype)

    flat = pred.reshape(-1)                       # free (contiguous) reshape
    n_main = (n // LANES) * LANES                 # 128-aligned prefix
    tail_sum = jnp.zeros((), jnp.float32)
    if n_main < n:
        # <128-element tail: negligible; avoids jnp.pad'ing the whole tensor
        # (which would ~3x the HBM traffic of this bandwidth-bound kernel).
        tail_sum = jnp.sum(flat[n_main:].astype(jnp.float32))
    if n_main == 0:
        return (-(tail_sum / n)).astype(out_dtype)

    rows = n_main // LANES
    x2d = (flat if n_main == n else flat[:n_main]).reshape(rows, LANES)

    # Dtype-aware byte budget: ~8 MiB per block so per-block DMA time
    # (~2.5 us on v7x, ~6 us v6e, ~10 us v5e) dominates the ~0.35 us
    # per-grid-step overhead -> >90% of HBM roofline for any input dtype.
    if block_rows is None:
        itemsize = pred.dtype.itemsize
        block_rows = max(ACC_ROWS,
                         (BLOCK_BYTES // (LANES * itemsize)) // ACC_ROWS * ACC_ROWS)
    else:
        block_rows = max(SUBLANES, (block_rows // SUBLANES) * SUBLANES)
    br = rows if rows <= block_rows else block_rows   # single block == full dim OK
    nblocks = pl.cdiv(rows, br)

    # Per-split accumulator width (32 rows = 4 independent vregs when possible).
    out_rows = ACC_ROWS if br % ACC_ROWS == 0 else SUBLANES

    if num_core_splits is None:
        num_core_splits = _default_num_core_splits()
    split = num_core_splits if nblocks >= num_core_splits else 1
    bpc = pl.cdiv(nblocks, split)                 # row blocks per core split

    # Compile-time: is there any block that needs edge masking at all?
    any_mask = (rows % br != 0) or (split * bpc != nblocks)

    def in_index_map(c, i):
        b = c * bpc + i
        if split * bpc != nblocks:
            # Redundant trailing blocks on the short split: clamp so the DMA
            # stays in bounds; their contribution is zeroed by the edge mask.
            b = jnp.minimum(b, nblocks - 1)
        return (b, 0)

    kernel = functools.partial(_partial_sum_kernel, rows_valid=rows,
                               out_rows=out_rows, any_mask=any_mask)

    partials = pl.pallas_call(
        kernel,
        out_shape=jax.ShapeDtypeStruct((split * out_rows, LANES), jnp.float32),
        grid_spec=pltpu.PrefetchScalarGridSpec(
            num_scalar_prefetch=0,
            grid=(split, bpc),
            in_specs=[pl.BlockSpec((br, LANES), in_index_map)],
            out_specs=pl.BlockSpec((out_rows, LANES), lambda c, i: (c, 0)),
        ),
        compiler_params=pltpu.CompilerParams(
            dimension_semantics=("parallel", "arbitrary"),
            # 8 MiB block x 2 buffers + tiny output fits on every generation
            # (v7x: 64 MiB physical/TC; v5e's *default* scoped limit is only
            # 16 MiB, so the explicit bump is required there).
            vmem_limit_bytes=40 * 1024 * 1024,
        ),
    )(x2d)

    total = jnp.sum(partials, dtype=jnp.float32) + tail_sum
    return (-(total / n)).astype(out_dtype)


if __name__ == "__main__":
    key = jax.random.PRNGKey(0)
    k1, k2, k3 = jax.random.split(key, 3)

    def check(loss, pred):
        ref = -jnp.mean(pred.astype(jnp.float32))
        assert jnp.allclose(loss, ref, atol=1e-6, rtol=1e-5), (loss, ref)

    # 1) NCHW discriminator-style prediction (lane-aligned size), forced
    #    through the Pallas kernel (single-block, unmasked reshape/VPU-add path).
    pred1 = jax.random.normal(k1, (2, 4, 16, 16), dtype=jnp.float32)
    loss1 = generator_loss(pred1, min_kernel_bytes=0)
    jax.block_until_ready(loss1)
    check(loss1, pred1)

    # 2) Unaligned element count (3*5*7*11 = 1155): exercises the <128-element
    #    tail path and the non-multiple-of-8 single-block fallback.
    pred2 = jax.random.normal(k2, (3, 5, 7, 11), dtype=jnp.float32)
    loss2 = generator_loss(pred2, min_kernel_bytes=0)
    jax.block_until_ready(loss2)
    check(loss2, pred2)

    # 3) Multi-block + forced 2-way core split + gated edge-block masking
    #    (rows=35, block_rows=8 -> grid (2, 3); last real block partially
    #    masked, clamped redundant block fully masked).
    pred3 = jax.random.normal(k3, (5, 7, 128), dtype=jnp.float32)
    loss3 = generator_loss(pred3, min_kernel_bytes=0, block_rows=8,
                           num_core_splits=2)
    jax.block_until_ready(loss3)
    check(loss3, pred3)

    # 4) Widened (32,128) accumulator path + edge mask (rows=35, block_rows=32).
    loss4 = generator_loss(pred3, min_kernel_bytes=0, block_rows=32,
                           num_core_splits=2)
    jax.block_until_ready(loss4)
    check(loss4, pred3)

    # 5) Default small-input fast path (XLA fallback below the size threshold).
    loss5 = generator_loss(pred1)
    jax.block_until_ready(loss5)
    check(loss5, pred1)

    print("KERNEL_OK")
</pallas_src>

<mosaic_0001>
module attributes {stable_mosaic.version = 11 : i64} {
  func.func @_partial_sum_kernel(%arg0: i32, %arg1: i32, %arg2: memref<16x128xf32, #tpu.memory_space<vmem>>, %arg3: memref<8x128xf32, #tpu.memory_space<vmem>>) attributes {dimension_semantics = [#tpu.dimension_semantics<parallel>, #tpu.dimension_semantics<arbitrary>], iteration_bounds = array<i64: 1, 1>, scalar_prefetch = 0 : i64, scratch_operands = 0 : i64, tpu.core_type = #tpu.core_type<tc>, window_params = [{transform_indices = @transform_0, window_bounds = array<i64: 16, 128>}, {transform_indices = @transform_1, window_bounds = array<i64: 8, 128>}]} {
    %c0_i32 = arith.constant 0 : i32
    %0 = arith.cmpi eq, %arg1, %c0_i32 : i32
    %1 = arith.extui %0 : i1 to i32
    %c0_i32_0 = arith.constant 0 : i32
    %2 = arith.cmpi ne, %1, %c0_i32_0 : i32
    scf.if %2 {
      %cst_6 = arith.constant 0.000000e+00 : f32
      %9 = vector.broadcast %cst_6 : f32 to vector<8x128xf32>
      %c0_7 = arith.constant 0 : index
      %c0_8 = arith.constant 0 : index
      %10 = vector.load %arg3[%c0_7, %c0_8] : memref<8x128xf32, #tpu.memory_space<vmem>>, vector<8x128xf32>
      tpu.vector_store %arg3[%c0_7, %c0_8], %9 {strides = array<i32>} : memref<8x128xf32, #tpu.memory_space<vmem>>, vector<8x128xf32>,
    } else {
    }
    %c0 = arith.constant 0 : index
    %c0_1 = arith.constant 0 : index
    %3 = vector.load %arg2[%c0, %c0_1] : memref<16x128xf32, #tpu.memory_space<vmem>>, vector<16x128xf32>
    %c0_2 = arith.constant 0 : index
    %c0_3 = arith.constant 0 : index
    %4 = vector.load %arg3[%c0_2, %c0_3] : memref<8x128xf32, #tpu.memory_space<vmem>>, vector<8x128xf32>
    %5 = vector.shape_cast %3 : vector<16x128xf32> to vector<2x8x128xf32>
    %cst = arith.constant dense<0.000000e+00> : vector<8x128xf32>
    %6 = vector.multi_reduction <add>, %5, %cst [0] : vector<2x8x128xf32> to vector<8x128xf32>
    %7 = arith.addf %4, %6 : vector<8x128xf32>
    %c0_4 = arith.constant 0 : index
    %c0_5 = arith.constant 0 : index
    %8 = vector.load %arg3[%c0_4, %c0_5] : memref<8x128xf32, #tpu.memory_space<vmem>>, vector<8x128xf32>
    tpu.vector_store %arg3[%c0_4, %c0_5], %7 {strides = array<i32>} : memref<8x128xf32, #tpu.memory_space<vmem>>, vector<8x128xf32>,
    return
  }
  func.func @transform_0(%arg0: i32, %arg1: i32) -> (i32, i32) {
    %c1_i32 = arith.constant 1 : i32
    %0 = arith.muli %arg0, %c1_i32 : i32
    %1 = arith.addi %0, %arg1 : i32
    %c0_i32 = arith.constant 0 : i32
    %c0_i32_0 = arith.constant 0 : i32
    return %1, %c0_i32 : i32, i32
  }
  func.func @transform_1(%arg0: i32, %arg1: i32) -> (i32, i32) {
    %c0_i32 = arith.constant 0 : i32
    %c0_i32_0 = arith.constant 0 : i32
    return %arg0, %c0_i32 : i32, i32
  }
}

</mosaic_0001>

<llo_original>
// kernel: tpu_custom_call.1
$region0: #{tpu_custom_call.1}
  #allocation0 [shape = 'u32[]', space=smem, size = 0x4, offset = 0x4, fixed_abs, tag = 'smem constant byte address 0x4 - core index']
  #allocation1 [shape = 'u32[144,128]{1,0:T(1,128)}', space=vmem, size = 0x12000, scoped, tag = 'internal scratch']
  %s0 = inlined_call_operand.hbm [shape: f32[16,128], index: 0, kind: input, shape index: {}]
  %s1 = inlined_call_operand.hbm [shape: f32[8,128], index: 1, kind: output, shape index: {}]
  %s2 = sld [smem:[#allocation0]]
  $region22: #{tpu_custom_call.1} parent=0
    _
  %s4 = ssub.s32 1, %s2
  %s5 = scalar_select 0, %s4, %s2
  $region1: #{tpu_custom_call.1} parent=0
    #allocation2 [shape = 'u8[8192]{0}', space=vmem, size = 0x2000, scoped, tag = 'input window, operand 0, single buffered']
    #allocation3 [shape = 's32[1]{0}', space=sflag, size = 0x4, scoped, tag = 'scoped memory for tpu_custom_call.1']
    #allocation4 [shape = 's32[1]{0}', space=sflag, size = 0x4, scoped, tag = 'scoped memory for tpu_custom_call.1']
    #allocation5 [shape = 'u8[4096]{0}', space=vmem, size = 0x1000, scoped, tag = 'output window, operand 0, single buffered']
    %6 = vsyncpa [#allocation3], 0
    %7 = vsyncpa [#allocation4], 0
    // Predicated region
    $region2: #{tpu_custom_call.1} parent=1 // pred_check
      _
    $region3: #{tpu_custom_call.1} parent=1 // pred_check_branch
      %9 = sbr.rel (0) target = $region5
    $region4: #{tpu_custom_call.1} parent=1 // pred_region
      %s10 = sadd.s32 0, 0
      %s11 = smul.u32 2, %s10
      %s13 = ssub.s32 256, 256
      %14 = vsyncadd [#allocation3], %s13
      %s15 = smul.addr %s11, 128
      %s16 = scalar_lea.hbm %s0, %s15
      %s17 = sshll.u32 [#allocation2], 4
      %s18 = int_to_ptr.vmem [resolvable:$true] %s17
      %23 = dma.hbm_to_vmem [thread:$0]  %s16, 256, %s18, [#allocation3], 128, 128, 8
    $region5: #{tpu_custom_call.1} parent=1 // pred_fallthru
      _
    // Predicated region
    $region6: #{tpu_custom_call.1} parent=1 // pred_check
      _
    $region7: #{tpu_custom_call.1} parent=1 // pred_check_branch
      %25 = sbr.rel (0) target = $region9
    $region8: #{tpu_custom_call.1} parent=1 // pred_region
      %26 = dma.done [#allocation3], 256
    $region9: #{tpu_custom_call.1} parent=1 // pred_fallthru
      _
    %s27 = sadd.s32 0, 0
    %s28 = smul.u32 2, %s27
    %p29 = scmp.eq.s32.totalorder 0, 0
    // Predicated region
    $region10: #{tpu_custom_call.1} parent=1 // pred_check
      %p30 = pneg %p29
    $region11: #{tpu_custom_call.1} parent=1 // pred_check_branch
      %32 = sbr.rel (%p30) target = $region13
    $region12: #{tpu_custom_call.1} parent=1 // pred_region
      %33 = vst [vmem:[#allocation5] sm:$0xff] 0.0
    $region13: #{tpu_custom_call.1} parent=1 // pred_fallthru
      _
    %v34 = vld [vmem:[#allocation2] sm:$0xff]
    %v35 = vld [vmem:[#allocation2 + $0x8] sm:$0xff]
    %v36 = vld [vmem:[#allocation5] sm:$0xff]
    %v37 = vadd.f32 %v34, %v35
    %v38 = vadd.f32 %v36, %v37
    %39 = vst [vmem:[#allocation5] sm:$0xff] %v38
    // Predicated region
    $region14: #{tpu_custom_call.1} parent=1 // pred_check
      _
    $region15: #{tpu_custom_call.1} parent=1 // pred_check_branch
      %41 = sbr.rel (0) target = $region17
    $region16: #{tpu_custom_call.1} parent=1 // pred_region
      %s43 = ssub.s32 128, 128
      %44 = vsyncadd [#allocation4], %s43
      %s46 = sshll.u32 [#allocation5], 4
      %s47 = int_to_ptr.vmem [resolvable:$true] %s46
      %49 = dma.vmem_to_hbm [thread:$0]  %s47, 128, %s1, [#allocation4]
    $region17: #{tpu_custom_call.1} parent=1 // pred_fallthru
      _
    // Predicated region
    $region18: #{tpu_custom_call.1} parent=1 // pred_check
      _
    $region19: #{tpu_custom_call.1} parent=1 // pred_check_branch
      %51 = sbr.rel (0) target = $region21
    $region20: #{tpu_custom_call.1} parent=1 // pred_region
      %52 = dma.done [#allocation4], 128
    $region21: #{tpu_custom_call.1} parent=1 // pred_fallthru
      _
    %53 = vsyncpa [#allocation3], 1
    %54 = vsyncpa [#allocation4], 1

</llo_original>
